<compile_context>
chip_gen: v5e
topology: v5e:2x2
jax: 0.10.0
libtpu: 0.0.40
codegen_flags: <defaults>
</compile_context>

<pallas_src>
import jax
import jax.numpy as jnp
from jax.experimental import pallas as pl
from jax.experimental.pallas import tpu as pltpu


def _round_up(n: int, m: int) -> int:
    return ((n + m - 1) // m) * m


def _vmem_capacity_bytes() -> int:
    try:
        return int(pltpu.get_tpu_info().vmem_capacity_bytes)
    except Exception:
        return 64 << 20  # conservative per-core default (v7x)


# --------------------------------------------------------------------------
# Kernel
# --------------------------------------------------------------------------
def mlp_kernel(x_ref, w1_ref, b1_ref, w2_ref, b2_ref, o_ref):
    # fc1: (TB, I) @ (I, Hp) on the MXU, f32 accumulation
    h = jnp.dot(x_ref[...], w1_ref[...], preferred_element_type=jnp.float32)
    # bias + ReLU in f32 on the VPU (v5e-safe elementwise path)
    h = jnp.maximum(h + b1_ref[...].astype(jnp.float32), 0.0)
    # fc2: (TB, Hp) @ (Hp, O), f32 accumulation.  For the bf16 path the
    # intermediate is downcast to bf16 for the MXU (documented precision note).
    out = jnp.dot(h.astype(w2_ref.dtype), w2_ref[...],
                  preferred_element_type=jnp.float32)
    out = out + b2_ref[...].astype(jnp.float32)
    o_ref[...] = out.astype(o_ref.dtype)


# --------------------------------------------------------------------------
# VMEM bookkeeping
# --------------------------------------------------------------------------
def _vmem_need_bytes(tb, i, hp, o, w_itemsize, x_itemsize):
    # single-buffered resident params (pipeline_mode=Buffered(1))
    params = (i * hp + hp + hp * o + o) * w_itemsize
    # double-buffered activation tiles (input + output)
    acts = 2 * tb * (i + o) * x_itemsize
    # f32 intermediate h plus its potential cast copy for the second matmul
    inter = tb * hp * (4 + w_itemsize)
    return params + acts + inter + (2 << 20)  # headroom


# --------------------------------------------------------------------------
# Parameter preparation — run ONCE at load time (hoisted out of hot path)
# --------------------------------------------------------------------------
def prepare_params(w1, b1, w2, b2, *, use_bf16: bool = False, lane: int = 128):
    """Pad hidden dim to a lane multiple and reshape biases to (1, N), once."""
    I, H = w1.shape
    O = w2.shape[1]
    b1 = jnp.asarray(b1).reshape(1, H).astype(jnp.float32)
    b2 = jnp.asarray(b2).reshape(1, O).astype(jnp.float32)

    Hp = _round_up(H, lane)
    if Hp != H:
        # zero padding of hidden columns/rows is mathematically a no-op
        w1 = jnp.pad(w1, ((0, 0), (0, Hp - H)))
        b1 = jnp.pad(b1, ((0, 0), (0, Hp - H)))
        w2 = jnp.pad(w2, ((0, Hp - H), (0, 0)))

    if use_bf16:
        # Optional high-throughput MXU path; relaxes accuracy below 1e-5.
        w1 = w1.astype(jnp.bfloat16)
        w2 = w2.astype(jnp.bfloat16)

    return (w1, b1, w2, b2)


# --------------------------------------------------------------------------
# pallas_call builder + forward wrapper
# --------------------------------------------------------------------------
def _const_spec(shape, single_buffer):
    if single_buffer:
        return pl.BlockSpec(shape, lambda i: (0, 0),
                            pipeline_mode=pl.Buffered(1))
    return pl.BlockSpec(shape, lambda i: (0, 0))


def _build_mlp_call(B_pad, TB, I, Hp, O, out_dtype, vmem_limit, single_buffer):
    grid = (B_pad // TB,)
    return pl.pallas_call(
        mlp_kernel,
        out_shape=jax.ShapeDtypeStruct((B_pad, O), out_dtype),
        grid=grid,
        in_specs=[
            pl.BlockSpec((TB, I), lambda i: (i, 0)),   # activation tile
            _const_spec((I, Hp), single_buffer),       # W1 resident
            _const_spec((1, Hp), single_buffer),       # b1 resident
            _const_spec((Hp, O), single_buffer),       # W2 resident
            _const_spec((1, O), single_buffer),        # b2 resident
        ],
        # Natural (unpadded) output width: block last dim == full array dim,
        # so no padded HBM write + post-kernel slice is needed.
        out_specs=pl.BlockSpec((TB, O), lambda i: (i, 0)),
        compiler_params=pltpu.CompilerParams(
            dimension_semantics=("parallel",),         # megacore split on v7x
            vmem_limit_bytes=int(vmem_limit),
        ),
    )


def mlp_forward(x, params, *, block_b: int = 1024):
    w1, b1, w2, b2 = params
    orig_shape = x.shape
    I = orig_shape[-1]
    x2 = x.reshape(-1, I)
    B = x2.shape[0]
    Hp = w1.shape[1]
    O = w2.shape[1]

    if w1.dtype == jnp.bfloat16:
        x2 = x2.astype(jnp.bfloat16)

    x_item = jnp.dtype(x2.dtype).itemsize
    w_item = jnp.dtype(w1.dtype).itemsize

    cap = _vmem_capacity_bytes()
    budget = max(cap - (8 << 20), 16 << 20)

    # Batch tile: largest multiple of 8 (up to block_b) whose full footprint
    # (residents + double-buffered tiles + f32 intermediate) fits the budget.
    TB = min(block_b, _round_up(B, 8))
    while TB > 8 and _vmem_need_bytes(TB, I, Hp, O, w_item, x_item) > budget:
        TB = max(8, _round_up(TB // 2, 8))

    # Ensure >=2 grid steps when the batch allows, so the "parallel" axis can
    # actually be split across v7x's two TensorCores.
    if B >= 16 and _round_up(B, TB) // TB == 1:
        TB = _round_up(pl.cdiv(B, 2), 8)

    B_pad = _round_up(B, TB)
    if B_pad != B:
        x2 = jnp.pad(x2, ((0, B_pad - B), (0, 0)))

    need = _vmem_need_bytes(TB, I, Hp, O, w_item, x_item)
    vmem_limit = min(max(need, 32 << 20), budget)

    out_dtype = x.dtype
    try:
        call = _build_mlp_call(B_pad, TB, I, Hp, O, out_dtype, vmem_limit,
                               single_buffer=True)
        out = jax.block_until_ready(call(x2, w1, b1, w2, b2))
    except Exception:
        # Fallback: default (double-buffered) resident specs.
        call = _build_mlp_call(B_pad, TB, I, Hp, O, out_dtype, vmem_limit,
                               single_buffer=False)
        out = call(x2, w1, b1, w2, b2)

    out = out[:B]
    return out.reshape(orig_shape[:-1] + (O,))


def reference_forward(x, w1, b1, w2, b2):
    h = jnp.maximum(x @ w1 + b1, 0.0)
    return h @ w2 + b2


if __name__ == "__main__":
    # config: input_size=32, hidden_size=64, output_size=16, batch=8
    B, INPUT, HIDDEN, OUTPUT = 8, 32, 64, 16

    key = jax.random.PRNGKey(0)
    kx, kw1, kb1, kw2, kb2 = jax.random.split(key, 5)

    x = jax.random.normal(kx, (B, INPUT), dtype=jnp.float32)
    # Deterministic parameter init (Kaiming-uniform-like scale, synthetic),
    # with PyTorch-style 1-D biases.
    lim1 = 1.0 / float(INPUT) ** 0.5
    lim2 = 1.0 / float(HIDDEN) ** 0.5
    w1 = jax.random.uniform(kw1, (INPUT, HIDDEN), jnp.float32, -1.0, 1.0) * lim1
    b1 = jax.random.uniform(kb1, (HIDDEN,), jnp.float32, -1.0, 1.0) * lim1
    w2 = jax.random.uniform(kw2, (HIDDEN, OUTPUT), jnp.float32, -1.0, 1.0) * lim2
    b2 = jax.random.uniform(kb2, (OUTPUT,), jnp.float32, -1.0, 1.0) * lim2

    # Pad/reshape parameters once, outside the per-call hot path.
    params = prepare_params(w1, b1, w2, b2, use_bf16=False)

    out = mlp_forward(x, params)
    out = jax.block_until_ready(out)

    ref = reference_forward(x, w1, b1, w2, b2)
    assert out.shape == (B, OUTPUT)
    assert jnp.allclose(out, ref, atol=1e-5, rtol=1e-5), "mismatch vs reference"

    print("KERNEL_OK")
</pallas_src>

<mosaic_0001>
module attributes {stable_mosaic.version = 11 : i64} {
  func.func @mlp_kernel(%arg0: i32, %arg1: memref<8x32xf32, #tpu.memory_space<vmem>>, %arg2: memref<32x128xf32, #tpu.memory_space<vmem>>, %arg3: memref<1x128xf32, #tpu.memory_space<vmem>>, %arg4: memref<128x16xf32, #tpu.memory_space<vmem>>, %arg5: memref<1x16xf32, #tpu.memory_space<vmem>>, %arg6: memref<8x16xf32, #tpu.memory_space<vmem>>) attributes {dimension_semantics = [#tpu.dimension_semantics<parallel>], iteration_bounds = array<i64: 1>, scalar_prefetch = 0 : i64, scratch_operands = 0 : i64, tpu.core_type = #tpu.core_type<tc>, window_params = [{transform_indices = @transform_0, window_bounds = array<i64: 8, 32>}, {pipeline_mode = #tpu.pipeline_mode<synchronous>, transform_indices = @transform_1, window_bounds = array<i64: 32, 128>}, {pipeline_mode = #tpu.pipeline_mode<synchronous>, transform_indices = @transform_2, window_bounds = array<i64: 1, 128>}, {pipeline_mode = #tpu.pipeline_mode<synchronous>, transform_indices = @transform_3, window_bounds = array<i64: 128, 16>}, {pipeline_mode = #tpu.pipeline_mode<synchronous>, transform_indices = @transform_4, window_bounds = array<i64: 1, 16>}, {transform_indices = @transform_5, window_bounds = array<i64: 8, 16>}]} {
    %c0 = arith.constant 0 : index
    %c0_0 = arith.constant 0 : index
    %0 = vector.load %arg1[%c0, %c0_0] : memref<8x32xf32, #tpu.memory_space<vmem>>, vector<8x32xf32>
    %c0_1 = arith.constant 0 : index
    %c0_2 = arith.constant 0 : index
    %1 = vector.load %arg2[%c0_1, %c0_2] : memref<32x128xf32, #tpu.memory_space<vmem>>, vector<32x128xf32>
    %cst = arith.constant dense<0.000000e+00> : vector<8x128xf32>
    %2 = tpu.matmul %0, %1, %cst {dimension_numbers = #tpu.dot_dimension_numbers<[1], [0], [0], [1], [0, 0, 1, 1], [], []>} : vector<8x32xf32>, vector<32x128xf32>, vector<8x128xf32> -> vector<8x128xf32>
    %c0_3 = arith.constant 0 : index
    %c0_4 = arith.constant 0 : index
    %3 = vector.load %arg3[%c0_3, %c0_4] : memref<1x128xf32, #tpu.memory_space<vmem>>, vector<1x128xf32>
    %4 = vector.broadcast %3 : vector<1x128xf32> to vector<8x128xf32>
    %5 = arith.addf %2, %4 : vector<8x128xf32>
    %cst_5 = arith.constant 0.000000e+00 : f32
    %6 = vector.broadcast %cst_5 : f32 to vector<8x128xf32>
    %7 = arith.maximumf %5, %6 : vector<8x128xf32>
    %c0_6 = arith.constant 0 : index
    %c0_7 = arith.constant 0 : index
    %8 = vector.load %arg4[%c0_6, %c0_7] : memref<128x16xf32, #tpu.memory_space<vmem>>, vector<128x16xf32>
    %cst_8 = arith.constant dense<0.000000e+00> : vector<8x16xf32>
    %9 = tpu.matmul %7, %8, %cst_8 {dimension_numbers = #tpu.dot_dimension_numbers<[1], [0], [0], [1], [0, 0, 1, 1], [], []>} : vector<8x128xf32>, vector<128x16xf32>, vector<8x16xf32> -> vector<8x16xf32>
    %c0_9 = arith.constant 0 : index
    %c0_10 = arith.constant 0 : index
    %10 = vector.load %arg5[%c0_9, %c0_10] : memref<1x16xf32, #tpu.memory_space<vmem>>, vector<1x16xf32>
    %11 = vector.broadcast %10 : vector<1x16xf32> to vector<8x16xf32>
    %12 = arith.addf %9, %11 : vector<8x16xf32>
    %c0_11 = arith.constant 0 : index
    %c0_12 = arith.constant 0 : index
    %13 = vector.load %arg6[%c0_11, %c0_12] : memref<8x16xf32, #tpu.memory_space<vmem>>, vector<8x16xf32>
    tpu.vector_store %arg6[%c0_11, %c0_12], %12 {strides = array<i32>} : memref<8x16xf32, #tpu.memory_space<vmem>>, vector<8x16xf32>,
    return
  }
  func.func @transform_0(%arg0: i32) -> (i32, i32) {
    %c0_i32 = arith.constant 0 : i32
    %c0_i32_0 = arith.constant 0 : i32
    return %arg0, %c0_i32 : i32, i32
  }
  func.func @transform_1(%arg0: i32) -> (i32, i32) {
    %c0_i32 = arith.constant 0 : i32
    %c0_i32_0 = arith.constant 0 : i32
    %c0_i32_1 = arith.constant 0 : i32
    return %c0_i32, %c0_i32_0 : i32, i32
  }
  func.func @transform_2(%arg0: i32) -> (i32, i32) {
    %c0_i32 = arith.constant 0 : i32
    %c0_i32_0 = arith.constant 0 : i32
    %c0_i32_1 = arith.constant 0 : i32
    return %c0_i32, %c0_i32_0 : i32, i32
  }
  func.func @transform_3(%arg0: i32) -> (i32, i32) {
    %c0_i32 = arith.constant 0 : i32
    %c0_i32_0 = arith.constant 0 : i32
    %c0_i32_1 = arith.constant 0 : i32
    return %c0_i32, %c0_i32_0 : i32, i32
  }
  func.func @transform_4(%arg0: i32) -> (i32, i32) {
    %c0_i32 = arith.constant 0 : i32
    %c0_i32_0 = arith.constant 0 : i32
    %c0_i32_1 = arith.constant 0 : i32
    return %c0_i32, %c0_i32_0 : i32, i32
  }
  func.func @transform_5(%arg0: i32) -> (i32, i32) {
    %c0_i32 = arith.constant 0 : i32
    %c0_i32_0 = arith.constant 0 : i32
    return %arg0, %c0_i32 : i32, i32
  }
}

module attributes {stable_mosaic.version = 11 : i64} {
  func.func @mlp_kernel(%arg0: i32, %arg1: memref<8x32xf32, #tpu.memory_space<vmem>>, %arg2: memref<32x128xf32, #tpu.memory_space<vmem>>, %arg3: memref<1x128xf32, #tpu.memory_space<vmem>>, %arg4: memref<128x16xf32, #tpu.memory_space<vmem>>, %arg5: memref<1x16xf32, #tpu.memory_space<vmem>>, %arg6: memref<8x16xf32, #tpu.memory_space<vmem>>) attributes {dimension_semantics = [#tpu.dimension_semantics<parallel>], iteration_bounds = array<i64: 1>, scalar_prefetch = 0 : i64, scratch_operands = 0 : i64, tpu.core_type = #tpu.core_type<tc>, window_params = [{transform_indices = @transform_0, window_bounds = array<i64: 8, 32>}, {pipeline_mode = #tpu.pipeline_mode<synchronous>, transform_indices = @transform_1, window_bounds = array<i64: 32, 128>}, {pipeline_mode = #tpu.pipeline_mode<synchronous>, transform_indices = @transform_2, window_bounds = array<i64: 1, 128>}, {pipeline_mode = #tpu.pipeline_mode<synchronous>, transform_indices = @transform_3, window_bounds = array<i64: 128, 16>}, {pipeline_mode = #tpu.pipeline_mode<synchronous>, transform_indices = @transform_4, window_bounds = array<i64: 1, 16>}, {transform_indices = @transform_5, window_bounds = array<i64: 8, 16>}]} {
    %c0 = arith.constant 0 : index
    %c0_0 = arith.constant 0 : index
    %0 = vector.load %arg1[%c0, %c0_0] : memref<8x32xf32, #tpu.memory_space<vmem>>, vector<8x32xf32>
    %c0_1 = arith.constant 0 : index
    %c0_2 = arith.constant 0 : index
    %1 = vector.load %arg2[%c0_1, %c0_2] : memref<32x128xf32, #tpu.memory_space<vmem>>, vector<32x128xf32>
    %cst = arith.constant dense<0.000000e+00> : vector<8x128xf32>
    %2 = tpu.matmul %0, %1, %cst {dimension_numbers = #tpu.dot_dimension_numbers<[1], [0], [0], [1], [0, 0, 1, 1], [], []>} : vector<8x32xf32>, vector<32x128xf32>, vector<8x128xf32> -> vector<8x128xf32>
    %c0_3 = arith.constant 0 : index
    %c0_4 = arith.constant 0 : index
    %3 = vector.load %arg3[%c0_3, %c0_4] : memref<1x128xf32, #tpu.memory_space<vmem>>, vector<1x128xf32>
    %4 = vector.broadcast %3 : vector<1x128xf32> to vector<8x128xf32>
    %5 = arith.addf %2, %4 : vector<8x128xf32>
    %cst_5 = arith.constant 0.000000e+00 : f32
    %6 = vector.broadcast %cst_5 : f32 to vector<8x128xf32>
    %7 = arith.maximumf %5, %6 : vector<8x128xf32>
    %c0_6 = arith.constant 0 : index
    %c0_7 = arith.constant 0 : index
    %8 = vector.load %arg4[%c0_6, %c0_7] : memref<128x16xf32, #tpu.memory_space<vmem>>, vector<128x16xf32>
    %cst_8 = arith.constant dense<0.000000e+00> : vector<8x16xf32>
    %9 = tpu.matmul %7, %8, %cst_8 {dimension_numbers = #tpu.dot_dimension_numbers<[1], [0], [0], [1], [0, 0, 1, 1], [], []>} : vector<8x128xf32>, vector<128x16xf32>, vector<8x16xf32> -> vector<8x16xf32>
    %c0_9 = arith.constant 0 : index
    %c0_10 = arith.constant 0 : index
    %10 = vector.load %arg5[%c0_9, %c0_10] : memref<1x16xf32, #tpu.memory_space<vmem>>, vector<1x16xf32>
    %11 = vector.broadcast %10 : vector<1x16xf32> to vector<8x16xf32>
    %12 = arith.addf %9, %11 : vector<8x16xf32>
    %c0_11 = arith.constant 0 : index
    %c0_12 = arith.constant 0 : index
    %13 = vector.load %arg6[%c0_11, %c0_12] : memref<8x16xf32, #tpu.memory_space<vmem>>, vector<8x16xf32>
    tpu.vector_store %arg6[%c0_11, %c0_12], %12 {strides = array<i32>} : memref<8x16xf32, #tpu.memory_space<vmem>>, vector<8x16xf32>,
    return
  }
  func.func @transform_0(%arg0: i32) -> (i32, i32) {
    %c0_i32 = arith.constant 0 : i32
    %c0_i32_0 = arith.constant 0 : i32
    return %arg0, %c0_i32 : i32, i32
  }
  func.func @transform_1(%arg0: i32) -> (i32, i32) {
    %c0_i32 = arith.constant 0 : i32
    %c0_i32_0 = arith.constant 0 : i32
    %c0_i32_1 = arith.constant 0 : i32
    return %c0_i32, %c0_i32_0 : i32, i32
  }
  func.func @transform_2(%arg0: i32) -> (i32, i32) {
    %c0_i32 = arith.constant 0 : i32
    %c0_i32_0 = arith.constant 0 : i32
    %c0_i32_1 = arith.constant 0 : i32
    return %c0_i32, %c0_i32_0 : i32, i32
  }
  func.func @transform_3(%arg0: i32) -> (i32, i32) {
    %c0_i32 = arith.constant 0 : i32
    %c0_i32_0 = arith.constant 0 : i32
    %c0_i32_1 = arith.constant 0 : i32
    return %c0_i32, %c0_i32_0 : i32, i32
  }
  func.func @transform_4(%arg0: i32) -> (i32, i32) {
    %c0_i32 = arith.constant 0 : i32
    %c0_i32_0 = arith.constant 0 : i32
    %c0_i32_1 = arith.constant 0 : i32
    return %c0_i32, %c0_i32_0 : i32, i32
  }
  func.func @transform_5(%arg0: i32) -> (i32, i32) {
    %c0_i32 = arith.constant 0 : i32
    %c0_i32_0 = arith.constant 0 : i32
    return %arg0, %c0_i32 : i32, i32
  }
}

</mosaic_0001>

<llo_original>
// kernel: tpu_custom_call.1
$region0: #{tpu_custom_call.1}
  #allocation0 [shape = 'u32[]', space=smem, size = 0x4, offset = 0x4, fixed_abs, tag = 'smem constant byte address 0x4 - core index']
  #allocation1 [shape = 'u32[72,128]{1,0:T(1,128)}', space=vmem, size = 0x9000, scoped, tag = 'internal scratch']
  %s0 = inlined_call_operand.vmem [shape: f32[8,32], index: 0, kind: input, shape index: {}]
  %s1 = inlined_call_operand.vmem [shape: f32[32,128], index: 1, kind: input, shape index: {}]
  %s2 = inlined_call_operand.vmem [shape: f32[1,128], index: 2, kind: input, shape index: {}]
  %s3 = inlined_call_operand.vmem [shape: f32[128,16], index: 3, kind: input, shape index: {}]
  %s4 = inlined_call_operand.vmem [shape: f32[1,16], index: 4, kind: input, shape index: {}]
  %s5 = inlined_call_operand.hbm [shape: f32[8,16], index: 5, kind: output, shape index: {}]
  %s6 = sld [smem:[#allocation0]]
  $region30: #{tpu_custom_call.1} parent=0
    _
  %s8 = ssub.s32 1, %s6
  %s9 = scalar_select 0, %s8, %s6
  $region1: #{tpu_custom_call.1} parent=0
    #allocation2 [shape = 'u8[4096]{0}', space=vmem, size = 0x1000, scoped, tag = 'output window, operand 0, single buffered']
    #allocation3 [shape = 's32[1]{0}', space=sflag, size = 0x4, scoped, tag = 'scoped memory for tpu_custom_call.1']
    %10 = vsyncpa [#allocation3], 0
    // Predicated region
    $region2: #{tpu_custom_call.1} parent=1 // pred_check
      _
    $region3: #{tpu_custom_call.1} parent=1 // pred_check_branch
      %12 = sbr.rel (0) target = $region5
    $region4: #{tpu_custom_call.1} parent=1 // pred_region
      _
    $region5: #{tpu_custom_call.1} parent=1 // pred_fallthru
      _
    // Predicated region
    $region6: #{tpu_custom_call.1} parent=1 // pred_check
      _
    $region7: #{tpu_custom_call.1} parent=1 // pred_check_branch
      %14 = sbr.rel (0) target = $region9
    $region8: #{tpu_custom_call.1} parent=1 // pred_region
      _
    $region9: #{tpu_custom_call.1} parent=1 // pred_fallthru
      _
    // Predicated region
    $region10: #{tpu_custom_call.1} parent=1 // pred_check
      _
    $region11: #{tpu_custom_call.1} parent=1 // pred_check_branch
      %16 = sbr.rel (0) target = $region13
    $region12: #{tpu_custom_call.1} parent=1 // pred_region
      _
    $region13: #{tpu_custom_call.1} parent=1 // pred_fallthru
      _
    // Predicated region
    $region14: #{tpu_custom_call.1} parent=1 // pred_check
      _
    $region15: #{tpu_custom_call.1} parent=1 // pred_check_branch
      %18 = sbr.rel (0) target = $region17
    $region16: #{tpu_custom_call.1} parent=1 // pred_region
      _
    $region17: #{tpu_custom_call.1} parent=1 // pred_fallthru
      _
    // Predicated region
    $region18: #{tpu_custom_call.1} parent=1 // pred_check
      _
    $region19: #{tpu_custom_call.1} parent=1 // pred_check_branch
      %20 = sbr.rel (0) target = $region21
    $region20: #{tpu_custom_call.1} parent=1 // pred_region
      _
    $region21: #{tpu_custom_call.1} parent=1 // pred_fallthru
      _
    %v21 = vld [vmem:[%s0] sm:$0xff]
    %v22 = vld [vmem:[%s1] sm:$0xff]
    %v23 = vld [vmem:[%s1 + $0x8] sm:$0xff]
    %v24 = vld [vmem:[%s1 + $0x10] sm:$0xff]
    %v25 = vld [vmem:[%s1 + $0x18] sm:$0xff]
    %v26 = vld [vmem:[%s2] sm:$0x1]
    %v28 = vperm.slane %v26, 0
    %vm30 = vcmask 261120
    %v32 = vsel %vm30, %v21, 0
    %34 = vmatpush.msra.mxu0 0.0
    %35 = vmatpush.msra.mxu0 0.0
    %36 = vmatpush.msra.mxu0 0.0
    %37 = vmatpush.msra.mxu0 0.0
    %38 = vmatpush.msra.mxu0 0.0
    %39 = vmatpush.msra.mxu0 0.0
    %40 = vmatpush.msra.mxu0 0.0
    %41 = vmatpush.msra.mxu0 0.0
    %42 = vmatpush.msra.mxu0 0.0
    %43 = vmatpush.msra.mxu0 0.0
    %44 = vmatpush.msra.mxu0 0.0
    %45 = vmatpush.msra.mxu0 0.0
    %46 = vmatpush.msra.mxu0 %v25
    %47 = vmatpush.msra.mxu0 %v24
    %48 = vmatpush.msra.mxu0 %v23
    %49 = vmatpush.msra.mxu0 %v22
    %50 = vmatmul.f32.gmra.mxu0 %v32
    %v51 = vpop.f32.mrf.mxu0
    %v52 = vadd.f32 %v28, %v51
    %53 = vdwg.mxu0
    %v54 = vmax.f32 %v52, 0.0
    %v55 = vld [vmem:[%s3] sm:$0xff]
    %v56 = vld [vmem:[%s3 + $0x8] sm:$0xff]
    %v57 = vld [vmem:[%s3 + $0x10] sm:$0xff]
    %v58 = vld [vmem:[%s3 + $0x18] sm:$0xff]
    %v59 = vld [vmem:[%s3 + $0x20] sm:$0xff]
    %v60 = vld [vmem:[%s3 + $0x28] sm:$0xff]
    %v61 = vld [vmem:[%s3 + $0x30] sm:$0xff]
    %v62 = vld [vmem:[%s3 + $0x38] sm:$0xff]
    %v63 = vld [vmem:[%s3 + $0x40] sm:$0xff]
    %v64 = vld [vmem:[%s3 + $0x48] sm:$0xff]
    %v65 = vld [vmem:[%s3 + $0x50] sm:$0xff]
    %v66 = vld [vmem:[%s3 + $0x58] sm:$0xff]
    %v67 = vld [vmem:[%s3 + $0x60] sm:$0xff]
    %v68 = vld [vmem:[%s3 + $0x68] sm:$0xff]
    %v69 = vld [vmem:[%s3 + $0x70] sm:$0xff]
    %v70 = vld [vmem:[%s3 + $0x78] sm:$0xff]
    %v71 = vld [vmem:[%s4] sm:$0x1]
    %v73 = vperm.slane %v71, 0
    %75 = vmatpush.msra.mxu0 %v70
    %76 = vmatpush.msra.mxu0 %v69
    %77 = vmatpush.msra.mxu0 %v68
    %78 = vmatpush.msra.mxu0 %v67
    %79 = vmatpush.msra.mxu0 %v66
    %80 = vmatpush.msra.mxu0 %v65
    %81 = vmatpush.msra.mxu0 %v64
    %82 = vmatpush.msra.mxu0 %v63
    %83 = vmatpush.msra.mxu0 %v62
    %84 = vmatpush.msra.mxu0 %v61
    %85 = vmatpush.msra.mxu0 %v60
    %86 = vmatpush.msra.mxu0 %v59
    %87 = vmatpush.msra.mxu0 %v58
    %88 = vmatpush.msra.mxu0 %v57
    %89 = vmatpush.msra.mxu0 %v56
    %90 = vmatpush.msra.mxu0 %v55
    %91 = vmatmul.f32.gmra.mxu0 %v54
    %v92 = vpop.f32.mrf.mxu0
    %v93 = vadd.f32 %v73, %v92
    %94 = vdwg.mxu0
    %vm95 = vcmask 130048
    %96 = vst.msk [vmem:[#allocation2] sm:$0xff] %vm95, %v93
    // Predicated region
    $region22: #{tpu_custom_call.1} parent=1 // pred_check
      _
    $region23: #{tpu_custom_call.1} parent=1 // pred_check_branch
      %98 = sbr.rel (0) target = $region25
    $region24: #{tpu_custom_call.1} parent=1 // pred_region
      %100 = vsyncadd [#allocation3], 0
      %s102 = sshll.u32 [#allocation2], 4
      %s103 = int_to_ptr.vmem [resolvable:$true] %s102
      %s104 = sshll.u32 %s5, 4
      %s105 = int_to_ptr.hbm [resolvable:$true] %s104
      %107 = dma.vmem_to_hbm [thread:$0]  %s103, 128, %s105, [#allocation3]
    $region25: #{tpu_custom_call.1} parent=1 // pred_fallthru
      _
    // Predicated region
    $region26: #{tpu_custom_call.1} parent=1 // pred_check
      _
    $region27: #{tpu_custom_call.1} parent=1 // pred_check_branch
      %109 = sbr.rel (0) target = $region29
    $region28: #{tpu_custom_call.1} parent=1 // pred_region
      %111 = dma.done [#allocation3], 128
    $region29: #{tpu_custom_call.1} parent=1 // pred_fallthru
      _
    %112 = vsyncpa [#allocation3], 1

// kernel: tpu_custom_call.1
$region0: #{tpu_custom_call.1}
  #allocation0 [shape = 'u32[]', space=smem, size = 0x4, offset = 0x4, fixed_abs, tag = 'smem constant byte address 0x4 - core index']
  #allocation1 [shape = 'u32[72,128]{1,0:T(1,128)}', space=vmem, size = 0x9000, scoped, tag = 'internal scratch']
  %s0 = inlined_call_operand.vmem [shape: f32[8,32], index: 0, kind: input, shape index: {}]
  %s1 = inlined_call_operand.vmem [shape: f32[32,128], index: 1, kind: input, shape index: {}]
  %s2 = inlined_call_operand.vmem [shape: f32[1,128], index: 2, kind: input, shape index: {}]
  %s3 = inlined_call_operand.vmem [shape: f32[128,16], index: 3, kind: input, shape index: {}]
  %s4 = inlined_call_operand.vmem [shape: f32[1,16], index: 4, kind: input, shape index: {}]
  %s5 = inlined_call_operand.hbm [shape: f32[8,16], index: 5, kind: output, shape index: {}]
  %s6 = sld [smem:[#allocation0]]
  $region30: #{tpu_custom_call.1} parent=0
    _
  %s8 = ssub.s32 1, %s6
  %s9 = scalar_select 0, %s8, %s6
  $region1: #{tpu_custom_call.1} parent=0
    #allocation2 [shape = 'u8[4096]{0}', space=vmem, size = 0x1000, scoped, tag = 'output window, operand 0, single buffered']
    #allocation3 [shape = 's32[1]{0}', space=sflag, size = 0x4, scoped, tag = 'scoped memory for tpu_custom_call.1']
    %10 = vsyncpa [#allocation3], 0
    // Predicated region
    $region2: #{tpu_custom_call.1} parent=1 // pred_check
      _
    $region3: #{tpu_custom_call.1} parent=1 // pred_check_branch
      %12 = sbr.rel (0) target = $region5
    $region4: #{tpu_custom_call.1} parent=1 // pred_region
      _
    $region5: #{tpu_custom_call.1} parent=1 // pred_fallthru
      _
    // Predicated region
    $region6: #{tpu_custom_call.1} parent=1 // pred_check
      _
    $region7: #{tpu_custom_call.1} parent=1 // pred_check_branch
      %14 = sbr.rel (0) target = $region9
    $region8: #{tpu_custom_call.1} parent=1 // pred_region
      _
    $region9: #{tpu_custom_call.1} parent=1 // pred_fallthru
      _
    // Predicated region
    $region10: #{tpu_custom_call.1} parent=1 // pred_check
      _
    $region11: #{tpu_custom_call.1} parent=1 // pred_check_branch
      %16 = sbr.rel (0) target = $region13
    $region12: #{tpu_custom_call.1} parent=1 // pred_region
      _
    $region13: #{tpu_custom_call.1} parent=1 // pred_fallthru
      _
    // Predicated region
    $region14: #{tpu_custom_call.1} parent=1 // pred_check
      _
    $region15: #{tpu_custom_call.1} parent=1 // pred_check_branch
      %18 = sbr.rel (0) target = $region17
    $region16: #{tpu_custom_call.1} parent=1 // pred_region
      _
    $region17: #{tpu_custom_call.1} parent=1 // pred_fallthru
      _
    // Predicated region
    $region18: #{tpu_custom_call.1} parent=1 // pred_check
      _
    $region19: #{tpu_custom_call.1} parent=1 // pred_check_branch
      %20 = sbr.rel (0) target = $region21
    $region20: #{tpu_custom_call.1} parent=1 // pred_region
      _
    $region21: #{tpu_custom_call.1} parent=1 // pred_fallthru
      _
    %v21 = vld [vmem:[%s0] sm:$0xff]
    %v22 = vld [vmem:[%s1] sm:$0xff]
    %v23 = vld [vmem:[%s1 + $0x8] sm:$0xff]
    %v24 = vld [vmem:[%s1 + $0x10] sm:$0xff]
    %v25 = vld [vmem:[%s1 + $0x18] sm:$0xff]
    %v26 = vld [vmem:[%s2] sm:$0x1]
    %v28 = vperm.slane %v26, 0
    %vm30 = vcmask 261120
    %v32 = vsel %vm30, %v21, 0
    %34 = vmatpush.msra.mxu0 0.0
    %35 = vmatpush.msra.mxu0 0.0
    %36 = vmatpush.msra.mxu0 0.0
    %37 = vmatpush.msra.mxu0 0.0
    %38 = vmatpush.msra.mxu0 0.0
    %39 = vmatpush.msra.mxu0 0.0
    %40 = vmatpush.msra.mxu0 0.0
    %41 = vmatpush.msra.mxu0 0.0
    %42 = vmatpush.msra.mxu0 0.0
    %43 = vmatpush.msra.mxu0 0.0
    %44 = vmatpush.msra.mxu0 0.0
    %45 = vmatpush.msra.mxu0 0.0
    %46 = vmatpush.msra.mxu0 %v25
    %47 = vmatpush.msra.mxu0 %v24
    %48 = vmatpush.msra.mxu0 %v23
    %49 = vmatpush.msra.mxu0 %v22
    %50 = vmatmul.f32.gmra.mxu0 %v32
    %v51 = vpop.f32.mrf.mxu0
    %v52 = vadd.f32 %v28, %v51
    %53 = vdwg.mxu0
    %v54 = vmax.f32 %v52, 0.0
    %v55 = vld [vmem:[%s3] sm:$0xff]
    %v56 = vld [vmem:[%s3 + $0x8] sm:$0xff]
    %v57 = vld [vmem:[%s3 + $0x10] sm:$0xff]
    %v58 = vld [vmem:[%s3 + $0x18] sm:$0xff]
    %v59 = vld [vmem:[%s3 + $0x20] sm:$0xff]
    %v60 = vld [vmem:[%s3 + $0x28] sm:$0xff]
    %v61 = vld [vmem:[%s3 + $0x30] sm:$0xff]
    %v62 = vld [vmem:[%s3 + $0x38] sm:$0xff]
    %v63 = vld [vmem:[%s3 + $0x40] sm:$0xff]
    %v64 = vld [vmem:[%s3 + $0x48] sm:$0xff]
    %v65 = vld [vmem:[%s3 + $0x50] sm:$0xff]
    %v66 = vld [vmem:[%s3 + $0x58] sm:$0xff]
    %v67 = vld [vmem:[%s3 + $0x60] sm:$0xff]
    %v68 = vld [vmem:[%s3 + $0x68] sm:$0xff]
    %v69 = vld [vmem:[%s3 + $0x70] sm:$0xff]
    %v70 = vld [vmem:[%s3 + $0x78] sm:$0xff]
    %v71 = vld [vmem:[%s4] sm:$0x1]
    %v73 = vperm.slane %v71, 0
    %75 = vmatpush.msra.mxu0 %v70
    %76 = vmatpush.msra.mxu0 %v69
    %77 = vmatpush.msra.mxu0 %v68
    %78 = vmatpush.msra.mxu0 %v67
    %79 = vmatpush.msra.mxu0 %v66
    %80 = vmatpush.msra.mxu0 %v65
    %81 = vmatpush.msra.mxu0 %v64
    %82 = vmatpush.msra.mxu0 %v63
    %83 = vmatpush.msra.mxu0 %v62
    %84 = vmatpush.msra.mxu0 %v61
    %85 = vmatpush.msra.mxu0 %v60
    %86 = vmatpush.msra.mxu0 %v59
    %87 = vmatpush.msra.mxu0 %v58
    %88 = vmatpush.msra.mxu0 %v57
    %89 = vmatpush.msra.mxu0 %v56
    %90 = vmatpush.msra.mxu0 %v55
    %91 = vmatmul.f32.gmra.mxu0 %v54
    %v92 = vpop.f32.mrf.mxu0
    %v93 = vadd.f32 %v73, %v92
    %94 = vdwg.mxu0
    %vm95 = vcmask 130048
    %96 = vst.msk [vmem:[#allocation2] sm:$0xff] %vm95, %v93
    // Predicated region
    $region22: #{tpu_custom_call.1} parent=1 // pred_check
      _
    $region23: #{tpu_custom_call.1} parent=1 // pred_check_branch
      %98 = sbr.rel (0) target = $region25
    $region24: #{tpu_custom_call.1} parent=1 // pred_region
      %100 = vsyncadd [#allocation3], 0
      %s102 = sshll.u32 [#allocation2], 4
      %s103 = int_to_ptr.vmem [resolvable:$true] %s102
      %s104 = sshll.u32 %s5, 4
      %s105 = int_to_ptr.hbm [resolvable:$true] %s104
      %107 = dma.vmem_to_hbm [thread:$0]  %s103, 128, %s105, [#allocation3]
    $region25: #{tpu_custom_call.1} parent=1 // pred_fallthru
      _
    // Predicated region
    $region26: #{tpu_custom_call.1} parent=1 // pred_check
      _
    $region27: #{tpu_custom_call.1} parent=1 // pred_check_branch
      %109 = sbr.rel (0) target = $region29
    $region28: #{tpu_custom_call.1} parent=1 // pred_region
      %111 = dma.done [#allocation3], 128
    $region29: #{tpu_custom_call.1} parent=1 // pred_fallthru
      _
    %112 = vsyncpa [#allocation3], 1

</llo_original>
